<compile_context>
chip_gen: v5e
topology: v5e:2x2
jax: 0.10.0
libtpu: 0.0.40
codegen_flags: <defaults>
</compile_context>

<pallas_src>
import functools

import jax
import jax.numpy as jnp
from jax import lax
from jax.experimental import pallas as pl
from jax.experimental.pallas import tpu as pltpu

HIDDEN_REPRESENTATION_DIM = 2048   # consts.HIDDEN_REPRESENTATION_DIM for resnet50
BN_EPS = 1e-5
VMEM_LIMIT_BYTES = 40 * 1024 * 1024


def _round_up(x, m):
    return ((x + m - 1) // m) * m


def _pick_tile(padded, candidates):
    for c in candidates:
        if padded % c == 0:
            return c
    return 128  # only reached if caller violates the %128 precondition


# ---------------------------------------------------------------------------
# Pallas kernels
# ---------------------------------------------------------------------------
def _matmul_bn_act_kernel(a_ref, w_ref, ss_ref, *rest, apply_relu,
                          has_residual, single_k, l2_norm):
    """out = act((A @ W) * scale + shift [+ residual]) [row-L2-normalized].

    ss_ref packs scale (row 0) and shift (row 1).  When single_k the whole K
    reduction happens in one grid step (no accumulator scratch); otherwise grid
    axis 2 reduces K into an f32 VMEM accumulator.
    """
    idx = 0
    res_ref = None
    if has_residual:
        res_ref = rest[idx]
        idx += 1
    o_ref = rest[idx]
    idx += 1
    acc_ref = None if single_k else rest[idx]

    def epilogue(acc):
        y = acc * ss_ref[0:1, :] + ss_ref[1:2, :]
        if has_residual:
            y = y + res_ref[...].astype(jnp.float32)
        if apply_relu:
            y = jnp.maximum(y, 0.0)
        if l2_norm:
            ssq = jnp.sum(y * y, axis=1, keepdims=True)
            y = y * lax.rsqrt(ssq + 1e-12)          # rsqrt hits the EUP slot
        o_ref[...] = y.astype(o_ref.dtype)

    if single_k:
        epilogue(jnp.dot(a_ref[...], w_ref[...],
                         preferred_element_type=jnp.float32))
    else:
        k = pl.program_id(2)

        @pl.when(k == 0)
        def _():
            acc_ref[...] = jnp.zeros_like(acc_ref)

        acc_ref[...] += jnp.dot(a_ref[...], w_ref[...],
                                preferred_element_type=jnp.float32)

        @pl.when(k == pl.num_programs(2) - 1)
        def _():
            epilogue(acc_ref[...])


def matmul_affine_act(a, w, scale, shift, relu, residual=None,
                      out_dtype=jnp.bfloat16, l2_normalize=False,
                      use_pallas=True):
    """act(a[:, :K] @ w * scale + shift (+ residual)) [row-L2-normalized].

    `a` is (M, Ka) with Ka >= K = w.shape[0]; extra columns of `a` (K-alignment
    padding folded into the im2col concatenate by the caller) must be zero so
    no separate padded copy of the patch matrix is ever materialized.
    """
    M, Ka = a.shape
    K, N = w.shape
    assert K <= Ka

    if not use_pallas:                       # pure-JAX f32 reference path
        y = (a.astype(jnp.float32)[:, :K] @ w.astype(jnp.float32)
             * scale.reshape(1, N).astype(jnp.float32)
             + shift.reshape(1, N).astype(jnp.float32))
        if residual is not None:
            y = y + residual.astype(jnp.float32)
        if relu:
            y = jnp.maximum(y, 0.0)
        if l2_normalize:
            y = y / jnp.sqrt(jnp.sum(y * y, axis=1, keepdims=True))
        return y.astype(out_dtype)

    a_p = a.astype(jnp.bfloat16)
    w_p = w.astype(jnp.bfloat16)
    if Ka > K:
        w_p = jnp.pad(w_p, ((0, Ka - K), (0, 0)))   # weights are small
    ss = jnp.stack([scale.astype(jnp.float32),
                    shift.astype(jnp.float32)], axis=0)            # (2, N)

    # ---- tile selection ---------------------------------------------------
    # M: full-dim block when small, otherwise 512-row tiles (the partial last
    # block is handled by Pallas; its garbage rows only feed discarded output).
    tm = M if M <= 512 else 512
    # N: 512/256/128 tiles when lane-aligned, else one full-dim block (e.g. the
    # 64-channel stem / layer1 outputs).
    tn = _pick_tile(N, (512, 256, 128)) if N % 128 == 0 else N
    # K: one full-K tile for every ResNet-50 layer (K <= 4608) -> no f32
    # accumulator RMW and a single K grid step.
    Kp = Ka
    if Kp <= 4608:
        tk = Kp
    else:
        # TODO(synk): huge-K fallback re-materializes a padded copy of A; never
        # hit for ResNet-50 (max K = 4608).
        Kp = _round_up(Ka, 512)
        a_p = jnp.pad(a_p, ((0, 0), (0, Kp - Ka)))
        w_p = jnp.pad(w_p, ((0, Kp - Ka), (0, 0)))
        tk = 512
    single_k = (tk == Kp)

    gm = pl.cdiv(M, tm)
    gn = pl.cdiv(N, tn)
    gk = Kp // tk
    if l2_normalize:
        # row L2-norm needs the full row and the full K reduction in one block
        assert gn == 1 and gk == 1
    elif gm * gn == 1 and tn % 256 == 0:
        # keep >=2 "parallel" tiles so v7x's second TensorCore is not idle
        tn //= 2
        gn = 2

    in_specs = [
        pl.BlockSpec((tm, tk), lambda m, n, k: (m, k)),
        pl.BlockSpec((tk, tn), lambda m, n, k: (k, n)),
        pl.BlockSpec((2, tn), lambda m, n, k: (0, n)),
    ]
    inputs = [a_p, w_p, ss]
    has_residual = residual is not None
    if has_residual:
        in_specs.append(pl.BlockSpec((tm, tn), lambda m, n, k: (m, n)))
        inputs.append(residual.astype(jnp.bfloat16))   # bf16 residual stream

    return pl.pallas_call(
        functools.partial(_matmul_bn_act_kernel, apply_relu=relu,
                          has_residual=has_residual, single_k=single_k,
                          l2_norm=l2_normalize),
        out_shape=jax.ShapeDtypeStruct((M, N), out_dtype),
        grid_spec=pltpu.PrefetchScalarGridSpec(
            num_scalar_prefetch=0,
            grid=(gm, gn, gk),
            in_specs=in_specs,
            out_specs=pl.BlockSpec((tm, tn), lambda m, n, k: (m, n)),
            scratch_shapes=([] if single_k
                            else [pltpu.VMEM((tm, tn), jnp.float32)]),
        ),
        compiler_params=pltpu.CompilerParams(
            dimension_semantics=("parallel", "parallel", "arbitrary"),
            vmem_limit_bytes=VMEM_LIMIT_BYTES),
    )(*inputs)


def _l2norm_kernel(x_ref, o_ref):
    x = x_ref[...]
    ssq = jnp.sum(x * x, axis=1, keepdims=True)
    o_ref[...] = x * lax.rsqrt(ssq + 1e-12)


def l2_normalize_rows(x, use_pallas=True):
    """Fallback standalone row L2-norm (used only when the feature dim is too
    large to fuse into the fc2 matmul epilogue)."""
    if not use_pallas:
        return x / jnp.sqrt(jnp.sum(x * x, axis=1, keepdims=True))
    B, F = x.shape
    Bp = max(8, _round_up(B, 8))
    Fp = _round_up(F, 128)
    xp = jnp.pad(x.astype(jnp.float32), ((0, Bp - B), (0, Fp - F)))
    out = pl.pallas_call(
        _l2norm_kernel,
        out_shape=jax.ShapeDtypeStruct((Bp, Fp), jnp.float32),
        grid=(1,),
        in_specs=[pl.BlockSpec((Bp, Fp), lambda i: (0, 0))],
        out_specs=pl.BlockSpec((Bp, Fp), lambda i: (0, 0)),
    )(xp)
    return out[:B, :F]


# ---------------------------------------------------------------------------
# Conv / pooling glue (patch extraction in plain JAX, matmul in Pallas)
# ---------------------------------------------------------------------------
def _im2col(x_nhwc, kh, kw, stride, padding, k_pad=0):
    B, H, W, C = x_nhwc.shape
    xp = jnp.pad(x_nhwc, ((0, 0), (padding, padding), (padding, padding), (0, 0)))
    Ho = (H + 2 * padding - kh) // stride + 1
    Wo = (W + 2 * padding - kw) // stride + 1
    cols = []
    for i in range(kh):
        for j in range(kw):
            patch = lax.slice(
                xp, (0, i, j, 0),
                (B, i + (Ho - 1) * stride + 1, j + (Wo - 1) * stride + 1, C),
                (1, stride, stride, 1))
            cols.append(patch)
    if k_pad:
        # Fold K-alignment zero pad into the concatenate so the padded patch
        # matrix is materialized exactly once (no extra jnp.pad HBM copy).
        cols.append(jnp.zeros((B, Ho, Wo, k_pad), x_nhwc.dtype))
    patches = jnp.concatenate(cols, axis=-1)      # (B, Ho, Wo, kh*kw*C + k_pad)
    return patches.reshape(B * Ho * Wo, kh * kw * C + k_pad), B, Ho, Wo


def conv_bn_act(x_nhwc, p, stride, padding, relu, residual=None, use_pallas=True):
    # TODO(synk): 3x3 convs still materialize the (bf16) im2col patch matrix;
    # a fully in-kernel shifted-window tap accumulation (stride-2 + batch-edge
    # discontinuities) has no clean BlockSpec expression and is future work.
    w = p["w"]                                    # (Cout, Cin, kh, kw) torch layout
    Cout, Cin, kh, kw = w.shape
    in_dt = jnp.bfloat16 if use_pallas else jnp.float32
    x = x_nhwc.astype(in_dt)
    if kh == 1 and kw == 1 and padding == 0:
        # 1x1 conv: bypass im2col with a pure (strided) reshape.
        if stride != 1:
            x = x[:, ::stride, ::stride, :]
        B, Ho, Wo, _ = x.shape
        a = x.reshape(B * Ho * Wo, Cin)
    else:
        K = kh * kw * Cin
        k_pad = (_round_up(K, 128) - K) if use_pallas else 0
        a, B, Ho, Wo = _im2col(x, kh, kw, stride, padding, k_pad=k_pad)
    w2d = jnp.transpose(w, (2, 3, 1, 0)).reshape(kh * kw * Cin, Cout)
    scale = p["gamma"] / jnp.sqrt(p["var"] + BN_EPS)  # fold inference BatchNorm
    shift = p["beta"] - p["mean"] * scale
    res2d = residual.reshape(-1, Cout) if residual is not None else None
    y = matmul_affine_act(a, w2d, scale, shift, relu, residual=res2d,
                          out_dtype=in_dt, use_pallas=use_pallas)
    return y.reshape(B, Ho, Wo, Cout)


def max_pool_3x3_s2(x_nhwc):
    # TODO(synk): 3x3/2 max-pool kept as plain-JAX reduce_window glue (minor op).
    return lax.reduce_window(x_nhwc, jnp.array(-jnp.inf, x_nhwc.dtype), lax.max,
                             (1, 3, 3, 1), (1, 2, 2, 1),
                             ((0, 0), (1, 1), (1, 1), (0, 0)))


# ---------------------------------------------------------------------------
# ResNet-50 + FC head forward (matches Encoder.forward semantics)
# ---------------------------------------------------------------------------
def bottleneck(x, blk, use_pallas=True):
    s = blk["stride"]
    out = conv_bn_act(x, blk["conv1"], 1, 0, True, use_pallas=use_pallas)
    out = conv_bn_act(out, blk["conv2"], s, 1, True, use_pallas=use_pallas)
    if "downsample" in blk:
        identity = conv_bn_act(x, blk["downsample"], s, 0, False,
                               use_pallas=use_pallas)
    else:
        identity = x
    # conv3: BN affine + residual add + ReLU fused into the matmul epilogue.
    return conv_bn_act(out, blk["conv3"], 1, 0, True, residual=identity,
                       use_pallas=use_pallas)


def encoder_forward(params, x_nchw, use_pallas=True):
    x = jnp.transpose(x_nchw, (0, 2, 3, 1)).astype(jnp.float32)   # NCHW -> NHWC
    x = conv_bn_act(x, params["stem"], 2, 3, True, use_pallas=use_pallas)
    x = max_pool_3x3_s2(x)
    for blocks in params["layers"]:
        for blk in blocks:
            x = bottleneck(x, blk, use_pallas)
    # adaptive avg-pool to (1,1) + flatten(start_dim=1)  (trivial glue reduction)
    feat = jnp.mean(x.astype(jnp.float32), axis=(1, 2))           # (B, 2048)
    H = HIDDEN_REPRESENTATION_DIM
    act_dt = jnp.bfloat16 if use_pallas else jnp.float32
    ones_h = jnp.ones((H,), jnp.float32)
    h = matmul_affine_act(feat, params["fc1_w"].T, ones_h, params["fc1_b"],
                          relu=True, out_dtype=act_dt,
                          use_pallas=use_pallas)                  # Linear + ReLU
    nf = params["fc2_b"].shape[0]
    ones_f = jnp.ones((nf,), jnp.float32)
    fuse_l2 = use_pallas and nf <= 512        # whole row fits one output tile
    y = matmul_affine_act(h, params["fc2_w"].T, ones_f, params["fc2_b"],
                          relu=True, out_dtype=jnp.float32,
                          l2_normalize=fuse_l2,
                          use_pallas=use_pallas)  # Linear + outer ReLU (+ fused L2)
    if not fuse_l2:
        y = l2_normalize_rows(y, use_pallas)      # (x.T / ||x||).T
    return y


# ---------------------------------------------------------------------------
# Deterministic synthetic parameters (shapes match torchvision resnet50 + head)
# ---------------------------------------------------------------------------
# TODO(synk): ImageNet-pretrained weights cannot be loaded in-script; parameters
# are deterministic synthetic values with the exact module shapes.
def _conv_bn_params(key, cout, cin, kh, kw):
    k1, k2, k3 = jax.random.split(key, 3)
    fan_in = cin * kh * kw
    return {
        "w": jax.random.normal(k1, (cout, cin, kh, kw), jnp.float32)
             * (2.0 / fan_in) ** 0.5,
        "gamma": 1.0 + 0.05 * jax.random.normal(k2, (cout,), jnp.float32),
        "beta": 0.05 * jax.random.normal(k3, (cout,), jnp.float32),
        "mean": jnp.zeros((cout,), jnp.float32),
        "var": jnp.ones((cout,), jnp.float32),
    }


def init_encoder_params(key, end_num_of_features):
    it = iter(jax.random.split(key, 256))
    params = {"stem": _conv_bn_params(next(it), 64, 3, 7, 7)}
    inplanes = 64
    layers = []
    for planes, nblocks, stride in [(64, 3, 1), (128, 4, 2),
                                    (256, 6, 2), (512, 3, 2)]:
        blocks = []
        for bi in range(nblocks):
            s = stride if bi == 0 else 1
            blk = {
                "stride": s,
                "conv1": _conv_bn_params(next(it), planes, inplanes, 1, 1),
                "conv2": _conv_bn_params(next(it), planes, planes, 3, 3),
                "conv3": _conv_bn_params(next(it), planes * 4, planes, 1, 1),
            }
            if bi == 0:
                blk["downsample"] = _conv_bn_params(next(it), planes * 4,
                                                    inplanes, 1, 1)
            blocks.append(blk)
            inplanes = planes * 4
        layers.append(blocks)
    params["layers"] = layers
    H = HIDDEN_REPRESENTATION_DIM
    k1, k2, k3, k4 = jax.random.split(next(it), 4)
    params["fc1_w"] = jax.random.normal(k1, (H, H), jnp.float32) / (H ** 0.5)
    params["fc1_b"] = 0.02 * jax.random.normal(k2, (H,), jnp.float32)
    params["fc2_w"] = jax.random.normal(k3, (end_num_of_features, H),
                                        jnp.float32) / (H ** 0.5)
    params["fc2_b"] = 0.02 * jax.random.normal(k4, (end_num_of_features,),
                                               jnp.float32)
    return params


if __name__ == "__main__":
    END_FEATURES = 128
    key = jax.random.PRNGKey(0)
    pkey, xkey = jax.random.split(key)
    params = init_encoder_params(pkey, END_FEATURES)
    # Small input consistent with the module (NCHW images); 32x32 keeps the
    # full ResNet-50 structure valid (layer4 ends at 1x1 spatial).
    x = jax.random.normal(xkey, (2, 3, 32, 32), jnp.float32)

    out = jax.block_until_ready(encoder_forward(params, x, use_pallas=True))
    ref = jax.block_until_ready(encoder_forward(params, x, use_pallas=False))

    assert out.shape == (2, END_FEATURES)
    assert not bool(jnp.any(jnp.isnan(out)))
    row_norms = jnp.sqrt(jnp.sum(out * out, axis=1))
    assert bool(jnp.all(jnp.abs(row_norms - 1.0) < 1e-3))
    cos = jnp.sum(out * ref, axis=1)
    assert bool(jnp.all(cos > 0.99))
    assert float(jnp.max(jnp.abs(out - ref))) < 1e-1

    print("KERNEL_OK")
</pallas_src>

<mosaic_0001>
module attributes {stable_mosaic.version = 11 : i64} {
  func.func @_matmul_bn_act_kernel(%arg0: i32, %arg1: i32, %arg2: i32, %arg3: memref<512x256xbf16, #tpu.memory_space<vmem>>, %arg4: memref<256x64xbf16, #tpu.memory_space<vmem>>, %arg5: memref<2x64xf32, #tpu.memory_space<vmem>>, %arg6: memref<512x64xbf16, #tpu.memory_space<vmem>>) attributes {dimension_semantics = [#tpu.dimension_semantics<parallel>, #tpu.dimension_semantics<parallel>, #tpu.dimension_semantics<arbitrary>], iteration_bounds = array<i64: 1, 1, 1>, scalar_prefetch = 0 : i64, scratch_operands = 0 : i64, tpu.core_type = #tpu.core_type<tc>, window_params = [{transform_indices = @transform_0, window_bounds = array<i64: 512, 256>}, {transform_indices = @transform_1, window_bounds = array<i64: 256, 64>}, {transform_indices = @transform_2, window_bounds = array<i64: 2, 64>}, {transform_indices = @transform_3, window_bounds = array<i64: 512, 64>}]} {
    %c0 = arith.constant 0 : index
    %c0_0 = arith.constant 0 : index
    %0 = vector.load %arg3[%c0, %c0_0] : memref<512x256xbf16, #tpu.memory_space<vmem>>, vector<512x256xbf16>
    %c0_1 = arith.constant 0 : index
    %c0_2 = arith.constant 0 : index
    %1 = vector.load %arg4[%c0_1, %c0_2] : memref<256x64xbf16, #tpu.memory_space<vmem>>, vector<256x64xbf16>
    %cst = arith.constant dense<0.000000e+00> : vector<512x64xf32>
    %2 = tpu.matmul %0, %1, %cst {dimension_numbers = #tpu.dot_dimension_numbers<[1], [0], [0], [1], [0, 0, 1, 1], [], []>} : vector<512x256xbf16>, vector<256x64xbf16>, vector<512x64xf32> -> vector<512x64xf32>
    %c0_3 = arith.constant 0 : index
    %c0_4 = arith.constant 0 : index
    %3 = vector.load %arg5[%c0_3, %c0_4] : memref<2x64xf32, #tpu.memory_space<vmem>>, vector<1x64xf32>
    %4 = vector.broadcast %3 : vector<1x64xf32> to vector<512x64xf32>
    %5 = arith.mulf %2, %4 : vector<512x64xf32>
    %c1 = arith.constant 1 : index
    %c0_5 = arith.constant 0 : index
    %6 = vector.load %arg5[%c1, %c0_5] : memref<2x64xf32, #tpu.memory_space<vmem>>, vector<1x64xf32>
    %7 = vector.broadcast %6 : vector<1x64xf32> to vector<512x64xf32>
    %8 = arith.addf %5, %7 : vector<512x64xf32>
    %cst_6 = arith.constant 0.000000e+00 : f32
    %9 = vector.broadcast %cst_6 : f32 to vector<512x64xf32>
    %10 = arith.maximumf %8, %9 : vector<512x64xf32>
    %11 = arith.truncf %10 : vector<512x64xf32> to vector<512x64xbf16>
    %c0_7 = arith.constant 0 : index
    %c0_8 = arith.constant 0 : index
    %12 = vector.load %arg6[%c0_7, %c0_8] : memref<512x64xbf16, #tpu.memory_space<vmem>>, vector<512x64xbf16>
    tpu.vector_store %arg6[%c0_7, %c0_8], %11 {strides = array<i32>} : memref<512x64xbf16, #tpu.memory_space<vmem>>, vector<512x64xbf16>,
    return
  }
  func.func @transform_0(%arg0: i32, %arg1: i32, %arg2: i32) -> (i32, i32) {
    %c0_i32 = arith.constant 0 : i32
    return %arg0, %arg2 : i32, i32
  }
  func.func @transform_1(%arg0: i32, %arg1: i32, %arg2: i32) -> (i32, i32) {
    %c0_i32 = arith.constant 0 : i32
    return %arg2, %arg1 : i32, i32
  }
  func.func @transform_2(%arg0: i32, %arg1: i32, %arg2: i32) -> (i32, i32) {
    %c0_i32 = arith.constant 0 : i32
    %c0_i32_0 = arith.constant 0 : i32
    return %c0_i32, %arg1 : i32, i32
  }
  func.func @transform_3(%arg0: i32, %arg1: i32, %arg2: i32) -> (i32, i32) {
    %c0_i32 = arith.constant 0 : i32
    return %arg0, %arg1 : i32, i32
  }
}

</mosaic_0001>

<llo_original>
// kernel: tpu_custom_call.1
$region0: #{tpu_custom_call.1}
  #allocation0 [shape = 'u32[]', space=smem, size = 0x4, offset = 0x4, fixed_abs, tag = 'smem constant byte address 0x4 - core index']
  #allocation1 [shape = 'u32[72,128]{1,0:T(1,128)}', space=vmem, size = 0x9000, scoped, tag = 'internal scratch']
  %s0 = inlined_call_operand.hbm [shape: bf16[512,256], index: 0, kind: input, shape index: {}]
  %s1 = inlined_call_operand.vmem [shape: bf16[256,64], index: 1, kind: input, shape index: {}]
  %s2 = inlined_call_operand.vmem [shape: f32[2,64], index: 2, kind: input, shape index: {}]
  %s3 = inlined_call_operand.vmem [shape: bf16[512,64], index: 3, kind: output, shape index: {}]
  %s4 = sld [smem:[#allocation0]]
  $region26: #{tpu_custom_call.1} parent=0
    _
  %s6 = ssub.s32 1, %s4
  %s7 = scalar_select 0, %s6, %s4
  $region1: #{tpu_custom_call.1} parent=0
    #allocation2 [shape = 'u8[262144]{0}', space=vmem, size = 0x40000, scoped, tag = 'input window, operand 0, single buffered']
    #allocation3 [shape = 's32[1]{0}', space=sflag, size = 0x4, scoped, tag = 'scoped memory for tpu_custom_call.1']
    %8 = vsyncpa [#allocation3], 0
    // Predicated region
    $region2: #{tpu_custom_call.1} parent=1 // pred_check
      _
    $region3: #{tpu_custom_call.1} parent=1 // pred_check_branch
      %10 = sbr.rel (0) target = $region5
    $region4: #{tpu_custom_call.1} parent=1 // pred_region
      %12 = vsyncadd [#allocation3], 0
      %s13 = sshll.u32 %s0, 4
      %s14 = int_to_ptr.hbm [resolvable:$true] %s13
      %s15 = sshll.u32 [#allocation2], 4
      %s16 = int_to_ptr.vmem [resolvable:$true] %s15
      %21 = dma.hbm_to_vmem [thread:$0]  %s14, 8192, %s16, [#allocation3], 128, 128, 8
    $region5: #{tpu_custom_call.1} parent=1 // pred_fallthru
      _
    // Predicated region
    $region6: #{tpu_custom_call.1} parent=1 // pred_check
      _
    $region7: #{tpu_custom_call.1} parent=1 // pred_check_branch
      %23 = sbr.rel (0) target = $region9
    $region8: #{tpu_custom_call.1} parent=1 // pred_region
      _
    $region9: #{tpu_custom_call.1} parent=1 // pred_fallthru
      _
    // Predicated region
    $region10: #{tpu_custom_call.1} parent=1 // pred_check
      _
    $region11: #{tpu_custom_call.1} parent=1 // pred_check_branch
      %25 = sbr.rel (0) target = $region13
    $region12: #{tpu_custom_call.1} parent=1 // pred_region
      _
    $region13: #{tpu_custom_call.1} parent=1 // pred_fallthru
      _
    // Predicated region
    $region14: #{tpu_custom_call.1} parent=1 // pred_check
      _
    $region15: #{tpu_custom_call.1} parent=1 // pred_check_branch
      %27 = sbr.rel (0) target = $region17
    $region16: #{tpu_custom_call.1} parent=1 // pred_region
      %29 = dma.done [#allocation3], 8192
    $region17: #{tpu_custom_call.1} parent=1 // pred_fallthru
      _
    %v30 = vld [vmem:[#allocation2] sm:$0xff]
    %v31 = vld [vmem:[#allocation2 + $0x8] sm:$0xff]
    %v32 = vld [vmem:[#allocation2 + $0x10] sm:$0xff]
    %v33 = vld [vmem:[#allocation2 + $0x18] sm:$0xff]
    %v34 = vld [vmem:[#allocation2 + $0x20] sm:$0xff]
    %v35 = vld [vmem:[#allocation2 + $0x28] sm:$0xff]
    %v36 = vld [vmem:[#allocation2 + $0x30] sm:$0xff]
    %v37 = vld [vmem:[#allocation2 + $0x38] sm:$0xff]
    %v38 = vld [vmem:[#allocation2 + $0x40] sm:$0xff]
    %v39 = vld [vmem:[#allocation2 + $0x48] sm:$0xff]
    %v40 = vld [vmem:[#allocation2 + $0x50] sm:$0xff]
    %v41 = vld [vmem:[#allocation2 + $0x58] sm:$0xff]
    %v42 = vld [vmem:[#allocation2 + $0x60] sm:$0xff]
    %v43 = vld [vmem:[#allocation2 + $0x68] sm:$0xff]
    %v44 = vld [vmem:[#allocation2 + $0x70] sm:$0xff]
    %v45 = vld [vmem:[#allocation2 + $0x78] sm:$0xff]
    %v46 = vld [vmem:[#allocation2 + $0x80] sm:$0xff]
    %v47 = vld [vmem:[#allocation2 + $0x88] sm:$0xff]
    %v48 = vld [vmem:[#allocation2 + $0x90] sm:$0xff]
    %v49 = vld [vmem:[#allocation2 + $0x98] sm:$0xff]
    %v50 = vld [vmem:[#allocation2 + $0xa0] sm:$0xff]
    %v51 = vld [vmem:[#allocation2 + $0xa8] sm:$0xff]
    %v52 = vld [vmem:[#allocation2 + $0xb0] sm:$0xff]
    %v53 = vld [vmem:[#allocation2 + $0xb8] sm:$0xff]
    %v54 = vld [vmem:[#allocation2 + $0xc0] sm:$0xff]
    %v55 = vld [vmem:[#allocation2 + $0xc8] sm:$0xff]
    %v56 = vld [vmem:[#allocation2 + $0xd0] sm:$0xff]
    %v57 = vld [vmem:[#allocation2 + $0xd8] sm:$0xff]
    %v58 = vld [vmem:[#allocation2 + $0xe0] sm:$0xff]
    %v59 = vld [vmem:[#allocation2 + $0xe8] sm:$0xff]
    %v60 = vld [vmem:[#allocation2 + $0xf0] sm:$0xff]
    %v61 = vld [vmem:[#allocation2 + $0xf8] sm:$0xff]
    %v62 = vld [vmem:[#allocation2 + $0x100] sm:$0xff]
    %v63 = vld [vmem:[#allocation2 + $0x108] sm:$0xff]
    %v64 = vld [vmem:[#allocation2 + $0x110] sm:$0xff]
    %v65 = vld [vmem:[#allocation2 + $0x118] sm:$0xff]
    %v66 = vld [vmem:[#allocation2 + $0x120] sm:$0xff]
    %v67 = vld [vmem:[#allocation2 + $0x128] sm:$0xff]
    %v68 = vld [vmem:[#allocation2 + $0x130] sm:$0xff]
    %v69 = vld [vmem:[#allocation2 + $0x138] sm:$0xff]
    %v70 = vld [vmem:[#allocation2 + $0x140] sm:$0xff]
    %v71 = vld [vmem:[#allocation2 + $0x148] sm:$0xff]
    %v72 = vld [vmem:[#allocation2 + $0x150] sm:$0xff]
    %v73 = vld [vmem:[#allocation2 + $0x158] sm:$0xff]
    %v74 = vld [vmem:[#allocation2 + $0x160] sm:$0xff]
    %v75 = vld [vmem:[#allocation2 + $0x168] sm:$0xff]
    %v76 = vld [vmem:[#allocation2 + $0x170] sm:$0xff]
    %v77 = vld [vmem:[#allocation2 + $0x178] sm:$0xff]
    %v78 = vld [vmem:[#allocation2 + $0x180] sm:$0xff]
    %v79 = vld [vmem:[#allocation2 + $0x188] sm:$0xff]
    %v80 = vld [vmem:[#allocation2 + $0x190] sm:$0xff]
    %v81 = vld [vmem:[#allocation2 + $0x198] sm:$0xff]
    %v82 = vld [vmem:[#allocation2 + $0x1a0] sm:$0xff]
    %v83 = vld [vmem:[#allocation2 + $0x1a8] sm:$0xff]
    %v84 = vld [vmem:[#allocation2 + $0x1b0] sm:$0xff]
    %v85 = vld [vmem:[#allocation2 + $0x1b8] sm:$0xff]
    %v86 = vld [vmem:[#allocation2 + $0x1c0] sm:$0xff]
    %v87 = vld [vmem:[#allocation2 + $0x1c8] sm:$0xff]
    %v88 = vld [vmem:[#allocation2 + $0x1d0] sm:$0xff]
    %v89 = vld [vmem:[#allocation2 + $0x1d8] sm:$0xff]
    %v90 = vld [vmem:[#allocation2 + $0x1e0] sm:$0xff]
    %v91 = vld [vmem:[#allocation2 + $0x1e8] sm:$0xff]
    %v92 = vld [vmem:[#allocation2 + $0x1f0] sm:$0xff]
    %v93 = vld [vmem:[#allocation2 + $0x1f8] sm:$0xff]
    %v94 = vld [vmem:[%s1] sm:$0xf]
    %v95 = vld [vmem:[%s1 + $0x4] sm:$0xf]
    %v96 = vld [vmem:[%s1 + $0x8] sm:$0xf]
    %v97 = vld [vmem:[%s1 + $0xc] sm:$0xf]
    %v98 = vld [vmem:[%s1 + $0x10] sm:$0xf]
    %v99 = vld [vmem:[%s1 + $0x14] sm:$0xf]
    %v100 = vld [vmem:[%s1 + $0x18] sm:$0xf]
    %v101 = vld [vmem:[%s1 + $0x1c] sm:$0xf]
    %v102 = vld [vmem:[%s1 + $0x20] sm:$0xf]
    %v103 = vld [vmem:[%s1 + $0x24] sm:$0xf]
    %v104 = vld [vmem:[%s1 + $0x28] sm:$0xf]
    %v105 = vld [vmem:[%s1 + $0x2c] sm:$0xf]
    %v106 = vld [vmem:[%s1 + $0x30] sm:$0xf]
    %v107 = vld [vmem:[%s1 + $0x34] sm:$0xf]
    %v108 = vld [vmem:[%s1 + $0x38] sm:$0xf]
    %v109 = vld [vmem:[%s1 + $0x3c] sm:$0xf]
    %v110 = vld [vmem:[%s1 + $0x40] sm:$0xf]
    %v111 = vld [vmem:[%s1 + $0x44] sm:$0xf]
    %v112 = vld [vmem:[%s1 + $0x48] sm:$0xf]
    %v113 = vld [vmem:[%s1 + $0x4c] sm:$0xf]
    %v114 = vld [vmem:[%s1 + $0x50] sm:$0xf]
    %v115 = vld [vmem:[%s1 + $0x54] sm:$0xf]
    %v116 = vld [vmem:[%s1 + $0x58] sm:$0xf]
    %v117 = vld [vmem:[%s1 + $0x5c] sm:$0xf]
    %v118 = vld [vmem:[%s1 + $0x60] sm:$0xf]
    %v119 = vld [vmem:[%s1 + $0x64] sm:$0xf]
    %v120 = vld [vmem:[%s1 + $0x68] sm:$0xf]
    %v121 = vld [vmem:[%s1 + $0x6c] sm:$0xf]
    %v122 = vld [vmem:[%s1 + $0x70] sm:$0xf]
    %v123 = vld [vmem:[%s1 + $0x74] sm:$0xf]
    %v124 = vld [vmem:[%s1 + $0x78] sm:$0xf]
    %v125 = vld [vmem:[%s1 + $0x7c] sm:$0xf]
    %v190 = vunpack.c.l.b16 %v30
    %v191 = vunpack.c.h.b16 %v30
    %v192 = vunpack.c.l.b16 %v31
    %v193 = vunpack.c.h.b16 %v31
    %v194 = vunpack.c.l.b16 %v32
    %v195 = vunpack.c.h.b16 %v32
    %v196 = vunpack.c.l.b16 %v33
    %v197 = vunpack.c.h.b16 %v33
    %v198 = vunpack.c.l.b16 %v34
    %v199 = vunpack.c.h.b16 %v34
    %v200 = vunpack.c.l.b16 %v35
    %v201 = vunpack.c.h.b16 %v35
    %v202 = vunpack.c.l.b16 %v36
    %v203 = vunpack.c.h.b16 %v36
    %v204 = vunpack.c.l.b16 %v37
    %v205 = vunpack.c.h.b16 %v37
    %v206 = vunpack.c.l.b16 %v38
    %v207 = vunpack.c.h.b16 %v38
    %v208 = vunpack.c.l.b16 %v39
    %v209 = vunpack.c.h.b16 %v39
    %v210 = vunpack.c.l.b16 %v40
    %v211 = vunpack.c.h.b16 %v40
    %v212 = vunpack.c.l.b16 %v41
    %v213 = vunpack.c.h.b16 %v41
    %v214 = vunpack.c.l.b16 %v42
    %v215 = vunpack.c.h.b16 %v42
    %v216 = vunpack.c.l.b16 %v43
    %v217 = vunpack.c.h.b16 %v43
    %v218 = vunpack.c.l.b16 %v44
    %v219 = vunpack.c.h.b16 %v44
    %v220 = vunpack.c.l.b16 %v45
    %v221 = vunpack.c.h.b16 %v45
    %v222 = vunpack.c.l.b16 %v46
    %v223 = vunpack.c.h.b16 %v46
    %v224 = vunpack.c.l.b16 %v47
    %v225 = vunpack.c.h.b16 %v47
    %v226 = vunpack.c.l.b16 %v48
    %v227 = vunpack.c.h.b16 %v48
    %v228 = vunpack.c.l.b16 %v49
    %v229 = vunpack.c.h.b16 %v49
    %v230 = vunpack.c.l.b16 %v50
    %v231 = vunpack.c.h.b16 %v50
    %v232 = vunpack.c.l.b16 %v51
    %v233 = vunpack.c.h.b16 %v51
    %v234 = vunpack.c.l.b16 %v52
    %v235 = vunpack.c.h.b16 %v52
    %v236 = vunpack.c.l.b16 %v53
    %v237 = vunpack.c.h.b16 %v53
    %v238 = vunpack.c.l.b16 %v54
    %v239 = vunpack.c.h.b16 %v54
    %v240 = vunpack.c.l.b16 %v55
    %v241 = vunpack.c.h.b16 %v55
    %v242 = vunpack.c.l.b16 %v56
    %v243 = vunpack.c.h.b16 %v56
    %v244 = vunpack.c.l.b16 %v57
    %v245 = vunpack.c.h.b16 %v57
    %v246 = vunpack.c.l.b16 %v58
    %v247 = vunpack.c.h.b16 %v58
    %v248 = vunpack.c.l.b16 %v59
    %v249 = vunpack.c.h.b16 %v59
    %v250 = vunpack.c.l.b16 %v60
    %v251 = vunpack.c.h.b16 %v60
    %v252 = vunpack.c.l.b16 %v61
    %v253 = vunpack.c.h.b16 %v61
    %v254 = vunpack.c.l.b16 %v62
    %v255 = vunpack.c.h.b16 %v62
    %v256 = vunpack.c.l.b16 %v63
    %v257 = vunpack.c.h.b16 %v63
    %v258 = vunpack.c.l.b16 %v64
    %v259 = vunpack.c.h.b16 %v64
    %v260 = vunpack.c.l.b16 %v65
    %v261 = vunpack.c.h.b16 %v65
    %v262 = vunpack.c.l.b16 %v66
    %v263 = vunpack.c.h.b16 %v66
    %v264 = vunpack.c.l.b16 %v67
    %v265 = vunpack.c.h.b16 %v67
    %v266 = vunpack.c.l.b16 %v68
    %v267 = vunpack.c.h.b16 %v68
    %v268 = vunpack.c.l.b16 %v69
    %v269 = vunpack.c.h.b16 %v69
    %v270 = vunpack.c.l.b16 %v70
    %v271 = vunpack.c.h.b16 %v70
    %v272 = vunpack.c.l.b16 %v71
    %v273 = vunpack.c.h.b16 %v71
    %v274 = vunpack.c.l.b16 %v72
    %v275 = vunpack.c.h.b16 %v72
    %v276 = vunpack.c.l.b16 %v73
    %v277 = vunpack.c.h.b16 %v73
    %v278 = vunpack.c.l.b16 %v74
    %v279 = vunpack.c.h.b16 %v74
    %v280 = vunpack.c.l.b16 %v75
    %v281 = vunpack.c.h.b16 %v75
    %v282 = vunpack.c.l.b16 %v76
    %v283 = vunpack.c.h.b16 %v76
    %v284 = vunpack.c.l.b16 %v77
    %v285 = vunpack.c.h.b16 %v77
    %v286 = vunpack.c.l.b16 %v78
    %v287 = vunpack.c.h.b16 %v78
    %v288 = vunpack.c.l.b16 %v79
    %v289 = vunpack.c.h.b16 %v79
    %v290 = vunpack.c.l.b16 %v80
    %v291 = vunpack.c.h.b16 %v80
    %v292 = vunpack.c.l.b16 %v81
    %v293 = vunpack.c.h.b16 %v81
    %v294 = vunpack.c.l.b16 %v82
    %v295 = vunpack.c.h.b16 %v82
    %v296 = vunpack.c.l.b16 %v83
    %v297 = vunpack.c.h.b16 %v83
    %v298 = vunpack.c.l.b16 %v84
    %v299 = vunpack.c.h.b16 %v84
    %v300 = vunpack.c.l.b16 %v85
    %v301 = vunpack.c.h.b16 %v85
    %v302 = vunpack.c.l.b16 %v86
    %v303 = vunpack.c.h.b16 %v86
    %v304 = vunpack.c.l.b16 %v87
    %v305 = vunpack.c.h.b16 %v87
    %v306 = vunpack.c.l.b16 %v88
    %v307 = vunpack.c.h.b16 %v88
    %v308 = vunpack.c.l.b16 %v89
    %v309 = vunpack.c.h.b16 %v89
    %v310 = vunpack.c.l.b16 %v90
    %v311 = vunpack.c.h.b16 %v90
    %v312 = vunpack.c.l.b16 %v91
    %v313 = vunpack.c.h.b16 %v91
    %v314 = vunpack.c.l.b16 %v92
    %v315 = vunpack.c.h.b16 %v92
    %v316 = vunpack.c.l.b16 %v93
    %v317 = vunpack.c.h.b16 %v93
    %v318 = vpack.c.b16 %v192, %v190
    %v319 = vpack.c.b16 %v193, %v191
    %v320 = vpack.c.b16 %v196, %v194
    %v321 = vpack.c.b16 %v197, %v195
    %v322 = vpack.c.b16 %v200, %v198
    %v323 = vpack.c.b16 %v201, %v199
    %v324 = vpack.c.b16 %v204, %v202
    %v325 = vpack.c.b16 %v205, %v203
    %v326 = vpack.c.b16 %v208, %v206
    %v327 = vpack.c.b16 %v209, %v207
    %v328 = vpack.c.b16 %v212, %v210
    %v329 = vpack.c.b16 %v213, %v211
    %v330 = vpack.c.b16 %v216, %v214
    %v331 = vpack.c.b16 %v217, %v215
    %v332 = vpack.c.b16 %v220, %v218
    %v333 = vpack.c.b16 %v221, %v219
    %v334 = vpack.c.b16 %v224, %v222
    %v335 = vpack.c.b16 %v225, %v223
    %v336 = vpack.c.b16 %v228, %v226
    %v337 = vpack.c.b16 %v229, %v227
    %v338 = vpack.c.b16 %v232, %v230
    %v339 = vpack.c.b16 %v233, %v231
    %v340 = vpack.c.b16 %v236, %v234
    %v341 = vpack.c.b16 %v237, %v235
    %v342 = vpack.c.b16 %v240, %v238
    %v343 = vpack.c.b16 %v241, %v239
    %v344 = vpack.c.b16 %v244, %v242
    %v345 = vpack.c.b16 %v245, %v243
    %v346 = vpack.c.b16 %v248, %v246
    %v347 = vpack.c.b16 %v249, %v247
    %v348 = vpack.c.b16 %v252, %v250
    %v349 = vpack.c.b16 %v253, %v251
    %v350 = vpack.c.b16 %v256, %v254
    %v351 = vpack.c.b16 %v257, %v255
    %v352 = vpack.c.b16 %v260, %v258
    %v353 = vpack.c.b16 %v261, %v259
    %v354 = vpack.c.b16 %v264, %v262
    %v355 = vpack.c.b16 %v265, %v263
    %v356 = vpack.c.b16 %v268, %v266
    %v357 = vpack.c.b16 %v269, %v267
    %v358 = vpack.c.b16 %v272, %v270
    %v359 = vpack.c.b16 %v273, %v271
    %v360 = vpack.c.b16 %v276, %v274
    %v361 = vpack.c.b16 %v277, %v275
    %v362 = vpack.c.b16 %v280, %v278
    %v363 = vpack.c.b16 %v281, %v279
    %v364 = vpack.c.b16 %v284, %v282
    %v365 = vpack.c.b16 %v285, %v283
    %v366 = vpack.c.b16 %v288, %v286
    %v367 = vpack.c.b16 %v289, %v287
    %v368 = vpack.c.b16 %v292, %v290
    %v369 = vpack.c.b16 %v293, %v291
    %v370 = vpack.c.b16 %v296, %v294
    %v371 = vpack.c.b16 %v297, %v295
    %v372 = vpack.c.b16 %v300, %v298
    %v373 = vpack.c.b16 %v301, %v299
    %v374 = vpack.c.b16 %v304, %v302
    %v375 = vpack.c.b16 %v305, %v303
    %v376 = vpack.c.b16 %v308, %v306
    %v377 = vpack.c.b16 %v309, %v307
    %v378 = vpack.c.b16 %v312, %v310
    %v379 = vpack.c.b16 %v313, %v311
    %v380 = vpack.c.b16 %v316, %v314
    %v381 = vpack.c.b16 %v317, %v315
    %v478 = vunpack.c.l.b16 %v94
    %v479 = vunpack.c.l.b16 %v95
    %v480 = vunpack.c.l.b16 %v96
    %v481 = vunpack.c.l.b16 %v97
    %v482 = vunpack.c.l.b16 %v98
    %v483 = vunpack.c.l.b16 %v99
    %v484 = vunpack.c.l.b16 %v100
    %v485 = vunpack.c.l.b16 %v101
    %v486 = vunpack.c.l.b16 %v102
    %v487 = vunpack.c.l.b16 %v103
    %v488 = vunpack.c.l.b16 %v104
    %v489 = vunpack.c.l.b16 %v105
    %v490 = vunpack.c.l.b16 %v106
    %v491 = vunpack.c.l.b16 %v107
    %v492 = vunpack.c.l.b16 %v108
    %v493 = vunpack.c.l.b16 %v109
    %v494 = vunpack.c.l.b16 %v110
    %v495 = vunpack.c.l.b16 %v111
    %v496 = vunpack.c.l.b16 %v112
    %v497 = vunpack.c.l.b16 %v113
    %v498 = vunpack.c.l.b16 %v114
    %v499 = vunpack.c.l.b16 %v115
    %v500 = vunpack.c.l.b16 %v116
    %v501 = vunpack.c.l.b16 %v117
    %v502 = vunpack.c.l.b16 %v118
    %v503 = vunpack.c.l.b16 %v119
    %v504 = vunpack.c.l.b16 %v120
    %v505 = vunpack.c.l.b16 %v121
    %v506 = vunpack.c.l.b16 %v122
    %v507 = vunpack.c.l.b16 %v123
    %v508 = vunpack.c.l.b16 %v124
    %v509 = vunpack.c.l.b16 %v125
    %v510 = vpack.c.b16 %v479, %v478
    %v511 = vpack.c.b16 %v481, %v480
    %v512 = vpack.c.b16 %v483, %v482
    %v513 = vpack.c.b16 %v485, %v484
    %v514 = vpack.c.b16 %v487, %v486
    %v515 = vpack.c.b16 %v489, %v488
    %v516 = vpack.c.b16 %v491, %v490
    %v517 = vpack.c.b16 %v493, %v492
    %v518 = vpack.c.b16 %v495, %v494
    %v519 = vpack.c.b16 %v497, %v496
    %v520 = vpack.c.b16 %v499, %v498
    %v521 = vpack.c.b16 %v501, %v500
    %v522 = vpack.c.b16 %v503, %v502
    %v523 = vpack.c.b16 %v505, %v504
    %v524 = vpack.c.b16 %v507, %v506
    %v525 = vpack.c.b16 %v509, %v508
    %542 = vmatpush.bf16.msra.mxu0 %v517
    %543 = vmatpush.bf16.msra.mxu0 %v516
    %544 = vmatpush.bf16.msra.mxu0 %v515
    %545 = vmatpush.bf16.msra.mxu0 %v514
    %546 = vmatpush.bf16.msra.mxu0 %v513
    %547 = vmatpush.bf16.msra.mxu0 %v512
    %548 = vmatpush.bf16.msra.mxu0 %v511
    %549 = vmatpush.bf16.msra.mxu0 %v510
    %550 = vmatmul.bf16.gmra.mxu0 %v318
    %v551 = vpop.f32.mrf.mxu0
    %v552 = vadd.f32 0.0, %v551
    %v553 = vpop.f32.mrf.mxu0
    %v554 = vadd.f32 0.0, %v553
    %555 = vmatmul.bf16.gmra.mxu0 %v320
    %v556 = vpop.f32.mrf.mxu0
    %v557 = vadd.f32 0.0, %v556
    %v558 = vpop.f32.mrf.mxu0
    %v559 = vadd.f32 0.0, %v558
    %560 = vmatmul.bf16.gmra.mxu0 %v322
    %v561 = vpop.f32.mrf.mxu0
    %v562 = vadd.f32 0.0, %v561
    %v563 = vpop.f32.mrf.mxu0
    %v564 = vadd.f32 0.0, %v563
    %565 = vmatmul.bf16.gmra.mxu0 %v324
    %v566 = vpop.f32.mrf.mxu0
    %v567 = vadd.f32 0.0, %v566
    %v568 = vpop.f32.mrf.mxu0
    %v569 = vadd.f32 0.0, %v568
    %570 = vmatmul.bf16.gmra.mxu0 %v326
    %v571 = vpop.f32.mrf.mxu0
    %v572 = vadd.f32 0.0, %v571
    %v573 = vpop.f32.mrf.mxu0
    %v574 = vadd.f32 0.0, %v573
    %575 = vmatmul.bf16.gmra.mxu0 %v328
    %v576 = vpop.f32.mrf.mxu0
    %v577 = vadd.f32 0.0, %v576
    %v578 = vpop.f32.mrf.mxu0
    %v579 = vadd.f32 0.0, %v578
    %580 = vmatmul.bf16.gmra.mxu0 %v330
    %v581 = vpop.f32.mrf.mxu0
    %v582 = vadd.f32 0.0, %v581
    %v583 = vpop.f32.mrf.mxu0
    %v584 = vadd.f32 0.0, %v583
    %585 = vmatmul.bf16.gmra.mxu0 %v332
    %v586 = vpop.f32.mrf.mxu0
    %v587 = vadd.f32 0.0, %v586
    %v588 = vpop.f32.mrf.mxu0
    %v589 = vadd.f32 0.0, %v588
    %590 = vmatmul.bf16.gmra.mxu0 %v334
    %v591 = vpop.f32.mrf.mxu0
    %v592 = vadd.f32 0.0, %v591
    %v593 = vpop.f32.mrf.mxu0
    %v594 = vadd.f32 0.0, %v593
    %595 = vmatmul.bf16.gmra.mxu0 %v336
    %v596 = vpop.f32.mrf.mxu0
    %v597 = vadd.f32 0.0, %v596
    %v598 = vpop.f32.mrf.mxu0
    %v599 = vadd.f32 0.0, %v598
    %600 = vmatmul.bf16.gmra.mxu0 %v338
    %v601 = vpop.f32.mrf.mxu0
    %v602 = vadd.f32 0.0, %v601
    %v603 = vpop.f32.mrf.mxu0
    %v604 = vadd.f32 0.0, %v603
    %605 = vmatmul.bf16.gmra.mxu0 %v340
    %v606 = vpop.f32.mrf.mxu0
    %v607 = vadd.f32 0.0, %v606
    %v608 = vpop.f32.mrf.mxu0
    %v609 = vadd.f32 0.0, %v608
    %610 = vmatmul.bf16.gmra.mxu0 %v342
    %v611 = vpop.f32.mrf.mxu0
    %v612 = vadd.f32 0.0, %v611
    %v613 = vpop.f32.mrf.mxu0
    %v614 = vadd.f32 0.0, %v613
    %615 = vmatmul.bf16.gmra.mxu0 %v344
    %v616 = vpop.f32.mrf.mxu0
    %v617 = vadd.f32 0.0, %v616
    %v618 = vpop.f32.mrf.mxu0
    %v619 = vadd.f32 0.0, %v618
    %620 = vmatmul.bf16.gmra.mxu0 %v346
    %v621 = vpop.f32.mrf.mxu0
    %v622 = vadd.f32 0.0, %v621
    %v623 = vpop.f32.mrf.mxu0
    %v624 = vadd.f32 0.0, %v623
    %625 = vmatmul.bf16.gmra.mxu0 %v348
    %v626 = vpop.f32.mrf.mxu0
    %v627 = vadd.f32 0.0, %v626
    %v628 = vpop.f32.mrf.mxu0
    %v629 = vadd.f32 0.0, %v628
    %630 = vmatmul.bf16.gmra.mxu0 %v350
    %v631 = vpop.f32.mrf.mxu0
    %v632 = vadd.f32 0.0, %v631
    %v633 = vpop.f32.mrf.mxu0
    %v634 = vadd.f32 0.0, %v633
    %635 = vmatmul.bf16.gmra.mxu0 %v352
    %v636 = vpop.f32.mrf.mxu0
    %v637 = vadd.f32 0.0, %v636
    %v638 = vpop.f32.mrf.mxu0
    %v639 = vadd.f32 0.0, %v638
    %640 = vmatmul.bf16.gmra.mxu0 %v354
    %v641 = vpop.f32.mrf.mxu0
    %v642 = vadd.f32 0.0, %v641
    %v643 = vpop.f32.mrf.mxu0
    %v644 = vadd.f32 0.0, %v643
    %645 = vmatmul.bf16.gmra.mxu0 %v356
    %v646 = vpop.f32.mrf.mxu0
    %v647 = vadd.f32 0.0, %v646
    %v648 = vpop.f32.mrf.mxu0
    %v649 = vadd.f32 0.0, %v648
    %650 = vmatmul.bf16.gmra.mxu0 %v358
    %v651 = vpop.f32.mrf.mxu0
    %v652 = vadd.f32 0.0, %v651
    %v653 = vpop.f32.mrf.mxu0
    %v654 = vadd.f32 0.0, %v653
    %655 = vmatmul.bf16.gmra.mxu0 %v360
    %v656 = vpop.f32.mrf.mxu0
    %v657 = vadd.f32 0.0, %v656
    %v658 = vpop.f32.mrf.mxu0
    %v659 = vadd.f32 0.0, %v658
    %660 = vmatmul.bf16.gmra.mxu0 %v362
    %v661 = vpop.f32.mrf.mxu0
    %v662 = vadd.f32 0.0, %v661
    %v663 = vpop.f32.mrf.mxu0
    %v664 = vadd.f32 0.0, %v663
    %665 = vmatmul.bf16.gmra.mxu0 %v364
    %v666 = vpop.f32.mrf.mxu0
    %v667 = vadd.f32 0.0, %v666
    %v668 = vpop.f32.mrf.mxu0
    %v669 = vadd.f32 0.0, %v668
    %670 = vmatmul.bf16.gmra.mxu0 %v366
    %v671 = vpop.f32.mrf.mxu0
    %v672 = vadd.f32 0.0, %v671
    %v673 = vpop.f32.mrf.mxu0
    %v674 = vadd.f32 0.0, %v673
    %675 = vmatmul.bf16.gmra.mxu0 %v368
    %v676 = vpop.f32.mrf.mxu0
    %v677 = vadd.f32 0.0, %v676
    %v678 = vpop.f32.mrf.mxu0
    %v679 = vadd.f32 0.0, %v678
    %680 = vmatmul.bf16.gmra.mxu0 %v370
    %v681 = vpop.f32.mrf.mxu0
    %v682 = vadd.f32 0.0, %v681
    %v683 = vpop.f32.mrf.mxu0
    %v684 = vadd.f32 0.0, %v683
    %685 = vmatmul.bf16.gmra.mxu0 %v372
    %v686 = vpop.f32.mrf.mxu0
    %v687 = vadd.f32 0.0, %v686
    %v688 = vpop.f32.mrf.mxu0
    %v689 = vadd.f32 0.0, %v688
    %690 = vmatmul.bf16.gmra.mxu0 %v374
    %v691 = vpop.f32.mrf.mxu0
    %v692 = vadd.f32 0.0, %v691
    %v693 = vpop.f32.mrf.mxu0
    %v694 = vadd.f32 0.0, %v693
    %695 = vmatmul.bf16.gmra.mxu0 %v376
    %v696 = vpop.f32.mrf.mxu0
    %v697 = vadd.f32 0.0, %v696
    %v698 = vpop.f32.mrf.mxu0
    %v699 = vadd.f32 0.0, %v698
    %700 = vmatmul.bf16.gmra.mxu0 %v378
    %v701 = vpop.f32.mrf.mxu0
    %v702 = vadd.f32 0.0, %v701
    %v703 = vpop.f32.mrf.mxu0
    %v704 = vadd.f32 0.0, %v703
    %705 = vmatmul.bf16.gmra.mxu0 %v380
    %v706 = vpop.f32.mrf.mxu0
    %v707 = vadd.f32 0.0, %v706
    %v708 = vpop.f32.mrf.mxu0
    %v709 = vadd.f32 0.0, %v708
    %710 = vdwg.mxu0
    %711 = vmatpush.bf16.msra.mxu0 %v525
    %712 = vmatpush.bf16.msra.mxu0 %v524
    %713 = vmatpush.bf16.msra.mxu0 %v523
    %714 = vmatpush.bf16.msra.mxu0 %v522
    %715 = vmatpush.bf16.msra.mxu0 %v521
    %716 = vmatpush.bf16.msra.mxu0 %v520
    %717 = vmatpush.bf16.msra.mxu0 %v519
    %718 = vmatpush.bf16.msra.mxu0 %v518
    %719 = vmatmul.bf16.gmra.mxu0 %v319
    %v720 = vpop.f32.mrf.mxu0
    %v721 = vadd.f32 %v552, %v720
    %v722 = vpop.f32.mrf.mxu0
    %v723 = vadd.f32 %v554, %v722
    %724 = vmatmul.bf16.gmra.mxu0 %v321
    %v725 = vpop.f32.mrf.mxu0
    %v726 = vadd.f32 %v557, %v725
    %v727 = vpop.f32.mrf.mxu0
    %v728 = vadd.f32 %v559, %v727
    %729 = vmatmul.bf16.gmra.mxu0 %v323
    %v730 = vpop.f32.mrf.mxu0
    %v731 = vadd.f32 %v562, %v730
    %v732 = vpop.f32.mrf.mxu0
    %v733 = vadd.f32 %v564, %v732
    %734 = vmatmul.bf16.gmra.mxu0 %v325
    %v735 = vpop.f32.mrf.mxu0
    %v736 = vadd.f32 %v567, %v735
    %v737 = vpop.f32.mrf.mxu0
    %v738 = vadd.f32 %v569, %v737
    %739 = vmatmul.bf16.gmra.mxu0 %v327
    %v740 = vpop.f32.mrf.mxu0
    %v741 = vadd.f32 %v572, %v740
    %v742 = vpop.f32.mrf.mxu0
    %v743 = vadd.f32 %v574, %v742
    %744 = vmatmul.bf16.gmra.mxu0 %v329
    %v745 = vpop.f32.mrf.mxu0
    %v746 = vadd.f32 %v577, %v745
    %v747 = vpop.f32.mrf.mxu0
    %v748 = vadd.f32 %v579, %v747
    %749 = vmatmul.bf16.gmra.mxu0 %v331
    %v750 = vpop.f32.mrf.mxu0
    %v751 = vadd.f32 %v582, %v750
    %v752 = vpop.f32.mrf.mxu0
    %v753 = vadd.f32 %v584, %v752
    %754 = vmatmul.bf16.gmra.mxu0 %v333
    %v755 = vpop.f32.mrf.mxu0
    %v756 = vadd.f32 %v587, %v755
    %v757 = vpop.f32.mrf.mxu0
    %v758 = vadd.f32 %v589, %v757
    %759 = vmatmul.bf16.gmra.mxu0 %v335
    %v760 = vpop.f32.mrf.mxu0
    %v761 = vadd.f32 %v592, %v760
    %v762 = vpop.f32.mrf.mxu0
    %v763 = vadd.f32 %v594, %v762
    %764 = vmatmul.bf16.gmra.mxu0 %v337
    %v765 = vpop.f32.mrf.mxu0
    %v766 = vadd.f32 %v597, %v765
    %v767 = vpop.f32.mrf.mxu0
    %v768 = vadd.f32 %v599, %v767
    %769 = vmatmul.bf16.gmra.mxu0 %v339
    %v770 = vpop.f32.mrf.mxu0
    %v771 = vadd.f32 %v602, %v770
    %v772 = vpop.f32.mrf.mxu0
    %v773 = vadd.f32 %v604, %v772
    %774 = vmatmul.bf16.gmra.mxu0 %v341
    %v775 = vpop.f32.mrf.mxu0
    %v776 = vadd.f32 %v607, %v775
    %v777 = vpop.f32.mrf.mxu0
    %v778 = vadd.f32 %v609, %v777
    %779 = vmatmul.bf16.gmra.mxu0 %v343
    %v780 = vpop.f32.mrf.mxu0
    %v781 = vadd.f32 %v612, %v780
    %v782 = vpop.f32.mrf.mxu0
    %v783 = vadd.f32 %v614, %v782
    %784 = vmatmul.bf16.gmra.mxu0 %v345
    %v785 = vpop.f32.mrf.mxu0
    %v786 = vadd.f32 %v617, %v785
    %v787 = vpop.f32.mrf.mxu0
    %v788 = vadd.f32 %v619, %v787
    %789 = vmatmul.bf16.gmra.mxu0 %v347
    %v790 = vpop.f32.mrf.mxu0
    %v791 = vadd.f32 %v622, %v790
    %v792 = vpop.f32.mrf.mxu0
    %v793 = vadd.f32 %v624, %v792
    %794 = vmatmul.bf16.gmra.mxu0 %v349
    %v795 = vpop.f32.mrf.mxu0
    %v796 = vadd.f32 %v627, %v795
    %v797 = vpop.f32.mrf.mxu0
    %v798 = vadd.f32 %v629, %v797
    %799 = vmatmul.bf16.gmra.mxu0 %v351
    %v800 = vpop.f32.mrf.mxu0
    %v801 = vadd.f32 %v632, %v800
    %v802 = vpop.f32.mrf.mxu0
    %v803 = vadd.f32 %v634, %v802
    %804 = vmatmul.bf16.gmra.mxu0 %v353
    %v805 = vpop.f32.mrf.mxu0
    %v806 = vadd.f32 %v637, %v805
    %v807 = vpop.f32.mrf.mxu0
    %v808 = vadd.f32 %v639, %v807
    %809 = vmatmul.bf16.gmra.mxu0 %v355
    %v810 = vpop.f32.mrf.mxu0
    %v811 = vadd.f32 %v642, %v810
    %v812 = vpop.f32.mrf.mxu0
    %v813 = vadd.f32 %v644, %v812
    %814 = vmatmul.bf16.gmra.mxu0 %v357
    %v815 = vpop.f32.mrf.mxu0
    %v816 = vadd.f32 %v647, %v815
    %v817 = vpop.f32.mrf.mxu0
    %v818 = vadd.f32 %v649, %v817
    %819 = vmatmul.bf16.gmra.mxu0 %v359
    %v820 = vpop.f32.mrf.mxu0
    %v821 = vadd.f32 %v652, %v820
    %v822 = vpop.f32.mrf.mxu0
    %v823 = vadd.f32 %v654, %v822
    %824 = vmatmul.bf16.gmra.mxu0 %v361
    %v825 = vpop.f32.mrf.mxu0
    %v826 = vadd.f32 %v657, %v825
    %v827 = vpop.f32.mrf.mxu0
    %v828 = vadd.f32 %v659, %v827
    %829 = vmatmul.bf16.gmra.mxu0 %v363
    %v830 = vpop.f32.mrf.mxu0
    %v831 = vadd.f32 %v662, %v830
    %v832 = vpop.f32.mrf.mxu0
    %v833 = vadd.f32 %v664, %v832
    %834 = vmatmul.bf16.gmra.mxu0 %v365
    %v835 = vpop.f32.mrf.mxu0
    %v836 = vadd.f32 %v667, %v835
    %v837 = vpop.f32.mrf.mxu0
    %v838 = vadd.f32 %v669, %v837
    %839 = vmatmul.bf16.gmra.mxu0 %v367
    %v840 = vpop.f32.mrf.mxu0
    %v841 = vadd.f32 %v672, %v840
    %v842 = vpop.f32.mrf.mxu0
    %v843 = vadd.f32 %v674, %v842
    %844 = vmatmul.bf16.gmra.mxu0 %v369
    %v845 = vpop.f32.mrf.mxu0
    %v846 = vadd.f32 %v677, %v845
    %v847 = vpop.f32.mrf.mxu0
    %v848 = vadd.f32 %v679, %v847
    %849 = vmatmul.bf16.gmra.mxu0 %v371
    %v850 = vpop.f32.mrf.mxu0
    %v851 = vadd.f32 %v682, %v850
    %v852 = vpop.f32.mrf.mxu0
    %v853 = vadd.f32 %v684, %v852
    %854 = vmatmul.bf16.gmra.mxu0 %v373
    %v855 = vpop.f32.mrf.mxu0
    %v856 = vadd.f32 %v687, %v855
    %v857 = vpop.f32.mrf.mxu0
    %v858 = vadd.f32 %v689, %v857
    %859 = vmatmul.bf16.gmra.mxu0 %v375
    %v860 = vpop.f32.mrf.mxu0
    %v861 = vadd.f32 %v692, %v860
    %v862 = vpop.f32.mrf.mxu0
    %v863 = vadd.f32 %v694, %v862
    %864 = vmatmul.bf16.gmra.mxu0 %v377
    %v865 = vpop.f32.mrf.mxu0
    %v866 = vadd.f32 %v697, %v865
    %v867 = vpop.f32.mrf.mxu0
    %v868 = vadd.f32 %v699, %v867
    %869 = vmatmul.bf16.gmra.mxu0 %v379
    %v870 = vpop.f32.mrf.mxu0
    %v871 = vadd.f32 %v702, %v870
    %v872 = vpop.f32.mrf.mxu0
    %v873 = vadd.f32 %v704, %v872
    %874 = vmatmul.bf16.gmra.mxu0 %v381
    %v875 = vpop.f32.mrf.mxu0
    %v876 = vadd.f32 %v707, %v875
    %v877 = vpop.f32.mrf.mxu0
    %v878 = vadd.f32 %v709, %v877
    %879 = vdwg.mxu0
    %v880 = vld [vmem:[%s2] sm:$0x1]
    %v881 = vperm.slane %v880, 0
    %v882 = vmul.f32 %v721, %v881
    %v883 = vmul.f32 %v723, %v881
    %v884 = vmul.f32 %v726, %v881
    %v885 = vmul.f32 %v728, %v881
    %v886 = vmul.f32 %v731, %v881
    %v887 = vmul.f32 %v733, %v881
    %v888 = vmul.f32 %v736, %v881
    %v889 = vmul.f32 %v738, %v881
    %v890 = vmul.f32 %v741, %v881
    %v891 = vmul.f32 %v743, %v881
    %v892 = vmul.f32 %v746, %v881
    %v893 = vmul.f32 %v748, %v881
    %v894 = vmul.f32 %v751, %v881
    %v895 = vmul.f32 %v753, %v881
    %v896 = vmul.f32 %v756, %v881
    %v897 = vmul.f32 %v758, %v881
    %v898 = vmul.f32 %v761, %v881
    %v899 = vmul.f32 %v763, %v881
    %v900 = vmul.f32 %v766, %v881
    %v901 = vmul.f32 %v768, %v881
    %v902 = vmul.f32 %v771, %v881
    %v903 = vmul.f32 %v773, %v881
    %v904 = vmul.f32 %v776, %v881
    %v905 = vmul.f32 %v778, %v881
    %v906 = vmul.f32 %v781, %v881
    %v907 = vmul.f32 %v783, %v881
    %v908 = vmul.f32 %v786, %v881
    %v909 = vmul.f32 %v788, %v881
    %v910 = vmul.f32 %v791, %v881
    %v911 = vmul.f32 %v793, %v881
    %v912 = vmul.f32 %v796, %v881
    %v913 = vmul.f32 %v798, %v881
    %v914 = vmul.f32 %v801, %v881
    %v915 = vmul.f32 %v803, %v881
    %v916 = vmul.f32 %v806, %v881
    %v917 = vmul.f32 %v808, %v881
    %v918 = vmul.f32 %v811, %v881
    %v919 = vmul.f32 %v813, %v881
    %v920 = vmul.f32 %v816, %v881
    %v921 = vmul.f32 %v818, %v881
    %v922 = vmul.f32 %v821, %v881
    %v923 = vmul.f32 %v823, %v881
    %v924 = vmul.f32 %v826, %v881
    %v925 = vmul.f32 %v828, %v881
    %v926 = vmul.f32 %v831, %v881
    %v927 = vmul.f32 %v833, %v881
    %v928 = vmul.f32 %v836, %v881
    %v929 = vmul.f32 %v838, %v881
    %v930 = vmul.f32 %v841, %v881
    %v931 = vmul.f32 %v843, %v881
    %v932 = vmul.f32 %v846, %v881
    %v933 = vmul.f32 %v848, %v881
    %v934 = vmul.f32 %v851, %v881
    %v935 = vmul.f32 %v853, %v881
    %v936 = vmul.f32 %v856, %v881
    %v937 = vmul.f32 %v858, %v881
    %v938 = vmul.f32 %v861, %v881
    %v939 = vmul.f32 %v863, %v881
    %v940 = vmul.f32 %v866, %v881
    %v941 = vmul.f32 %v868, %v881
    %v942 = vmul.f32 %v871, %v881
    %v943 = vmul.f32 %v873, %v881
    %v944 = vmul.f32 %v876, %v881
    %v945 = vmul.f32 %v878, %v881
    %v946 = vld [vmem:[%s2 + $0x1] sm:$0x1]
    %v947 = vperm.slane %v946, 0
    %v948 = vadd.f32 %v882, %v947
    %v949 = vadd.f32 %v883, %v947
    %v950 = vadd.f32 %v884, %v947
    %v951 = vadd.f32 %v885, %v947
    %v952 = vadd.f32 %v886, %v947
    %v953 = vadd.f32 %v887, %v947
    %v954 = vadd.f32 %v888, %v947
    %v955 = vadd.f32 %v889, %v947
    %v956 = vadd.f32 %v890, %v947
    %v957 = vadd.f32 %v891, %v947
    %v958 = vadd.f32 %v892, %v947
    %v959 = vadd.f32 %v893, %v947
    %v960 = vadd.f32 %v894, %v947
    %v961 = vadd.f32 %v895, %v947
    %v962 = vadd.f32 %v896, %v947
    %v963 = vadd.f32 %v897, %v947
    %v964 = vadd.f32 %v898, %v947
    %v965 = vadd.f32 %v899, %v947
    %v966 = vadd.f32 %v900, %v947
    %v967 = vadd.f32 %v901, %v947
    %v968 = vadd.f32 %v902, %v947
    %v969 = vadd.f32 %v903, %v947
    %v970 = vadd.f32 %v904, %v947
    %v971 = vadd.f32 %v905, %v947
    %v972 = vadd.f32 %v906, %v947
    %v973 = vadd.f32 %v907, %v947
    %v974 = vadd.f32 %v908, %v947
    %v975 = vadd.f32 %v909, %v947
    %v976 = vadd.f32 %v910, %v947
    %v977 = vadd.f32 %v911, %v947
    %v978 = vadd.f32 %v912, %v947
    %v979 = vadd.f32 %v913, %v947
    %v980 = vadd.f32 %v914, %v947
    %v981 = vadd.f32 %v915, %v947
    %v982 = vadd.f32 %v916, %v947
    %v983 = vadd.f32 %v917, %v947
    %v984 = vadd.f32 %v918, %v947
    %v985 = vadd.f32 %v919, %v947
    %v986 = vadd.f32 %v920, %v947
    %v987 = vadd.f32 %v921, %v947
    %v988 = vadd.f32 %v922, %v947
    %v989 = vadd.f32 %v923, %v947
    %v990 = vadd.f32 %v924, %v947
    %v991 = vadd.f32 %v925, %v947
    %v992 = vadd.f32 %v926, %v947
    %v993 = vadd.f32 %v927, %v947
    %v994 = vadd.f32 %v928, %v947
    %v995 = vadd.f32 %v929, %v947
    %v996 = vadd.f32 %v930, %v947
    %v997 = vadd.f32 %v931, %v947
    %v998 = vadd.f32 %v932, %v947
    %v999 = vadd.f32 %v933, %v947
    %v1000 = vadd.f32 %v934, %v947
    %v1001 = vadd.f32 %v935, %v947
    %v1002 = vadd.f32 %v936, %v947
    %v1003 = vadd.f32 %v937, %v947
    %v1004 = vadd.f32 %v938, %v947
    %v1005 = vadd.f32 %v939, %v947
    %v1006 = vadd.f32 %v940, %v947
    %v1007 = vadd.f32 %v941, %v947
    %v1008 = vadd.f32 %v942, %v947
    %v1009 = vadd.f32 %v943, %v947
    %v1010 = vadd.f32 %v944, %v947
    %v1011 = vadd.f32 %v945, %v947
    %v1012 = vmax.f32 %v948, 0.0
    %v1013 = vmax.f32 %v949, 0.0
    %v1014 = vmax.f32 %v950, 0.0
    %v1015 = vmax.f32 %v951, 0.0
    %v1016 = vmax.f32 %v952, 0.0
    %v1017 = vmax.f32 %v953, 0.0
    %v1018 = vmax.f32 %v954, 0.0
    %v1019 = vmax.f32 %v955, 0.0
    %v1020 = vmax.f32 %v956, 0.0
    %v1021 = vmax.f32 %v957, 0.0
    %v1022 = vmax.f32 %v958, 0.0
    %v1023 = vmax.f32 %v959, 0.0
    %v1024 = vmax.f32 %v960, 0.0
    %v1025 = vmax.f32 %v961, 0.0
    %v1026 = vmax.f32 %v962, 0.0
    %v1027 = vmax.f32 %v963, 0.0
    %v1028 = vmax.f32 %v964, 0.0
    %v1029 = vmax.f32 %v965, 0.0
    %v1030 = vmax.f32 %v966, 0.0
    %v1031 = vmax.f32 %v967, 0.0
    %v1032 = vmax.f32 %v968, 0.0
    %v1033 = vmax.f32 %v969, 0.0
    %v1034 = vmax.f32 %v970, 0.0
    %v1035 = vmax.f32 %v971, 0.0
    %v1036 = vmax.f32 %v972, 0.0
    %v1037 = vmax.f32 %v973, 0.0
    %v1038 = vmax.f32 %v974, 0.0
    %v1039 = vmax.f32 %v975, 0.0
    %v1040 = vmax.f32 %v976, 0.0
    %v1041 = vmax.f32 %v977, 0.0
    %v1042 = vmax.f32 %v978, 0.0
    %v1043 = vmax.f32 %v979, 0.0
    %v1044 = vmax.f32 %v980, 0.0
    %v1045 = vmax.f32 %v981, 0.0
    %v1046 = vmax.f32 %v982, 0.0
    %v1047 = vmax.f32 %v983, 0.0
    %v1048 = vmax.f32 %v984, 0.0
    %v1049 = vmax.f32 %v985, 0.0
    %v1050 = vmax.f32 %v986, 0.0
    %v1051 = vmax.f32 %v987, 0.0
    %v1052 = vmax.f32 %v988, 0.0
    %v1053 = vmax.f32 %v989, 0.0
    %v1054 = vmax.f32 %v990, 0.0
    %v1055 = vmax.f32 %v991, 0.0
    %v1056 = vmax.f32 %v992, 0.0
    %v1057 = vmax.f32 %v993, 0.0
    %v1058 = vmax.f32 %v994, 0.0
    %v1059 = vmax.f32 %v995, 0.0
    %v1060 = vmax.f32 %v996, 0.0
    %v1061 = vmax.f32 %v997, 0.0
    %v1062 = vmax.f32 %v998, 0.0
    %v1063 = vmax.f32 %v999, 0.0
    %v1064 = vmax.f32 %v1000, 0.0
    %v1065 = vmax.f32 %v1001, 0.0
    %v1066 = vmax.f32 %v1002, 0.0
    %v1067 = vmax.f32 %v1003, 0.0
    %v1068 = vmax.f32 %v1004, 0.0
    %v1069 = vmax.f32 %v1005, 0.0
    %v1070 = vmax.f32 %v1006, 0.0
    %v1071 = vmax.f32 %v1007, 0.0
    %v1072 = vmax.f32 %v1008, 0.0
    %v1073 = vmax.f32 %v1009, 0.0
    %v1074 = vmax.f32 %v1010, 0.0
    %v1075 = vmax.f32 %v1011, 0.0
    %v1076 = vpack.c.bf16 %v1012, %v1012
    %v1077 = vpack.c.bf16 %v1013, %v1013
    %v1078 = vpack.c.bf16 %v1014, %v1014
    %v1079 = vpack.c.bf16 %v1015, %v1015
    %v1080 = vpack.c.bf16 %v1016, %v1016
    %v1081 = vpack.c.bf16 %v1017, %v1017
    %v1082 = vpack.c.bf16 %v1018, %v1018
    %v1083 = vpack.c.bf16 %v1019, %v1019
    %v1084 = vpack.c.bf16 %v1020, %v1020
    %v1085 = vpack.c.bf16 %v1021, %v1021
    %v1086 = vpack.c.bf16 %v1022, %v1022
    %v1087 = vpack.c.bf16 %v1023, %v1023
    %v1088 = vpack.c.bf16 %v1024, %v1024
    %v1089 = vpack.c.bf16 %v1025, %v1025
    %v1090 = vpack.c.bf16 %v1026, %v1026
    %v1091 = vpack.c.bf16 %v1027, %v1027
    %v1092 = vpack.c.bf16 %v1028, %v1028
    %v1093 = vpack.c.bf16 %v1029, %v1029
    %v1094 = vpack.c.bf16 %v1030, %v1030
    %v1095 = vpack.c.bf16 %v1031, %v1031
    %v1096 = vpack.c.bf16 %v1032, %v1032
    %v1097 = vpack.c.bf16 %v1033, %v1033
    %v1098 = vpack.c.bf16 %v1034, %v1034
    %v1099 = vpack.c.bf16 %v1035, %v1035
    %v1100 = vpack.c.bf16 %v1036, %v1036
    %v1101 = vpack.c.bf16 %v1037, %v1037
    %v1102 = vpack.c.bf16 %v1038, %v1038
    %v1103 = vpack.c.bf16 %v1039, %v1039
    %v1104 = vpack.c.bf16 %v1040, %v1040
    %v1105 = vpack.c.bf16 %v1041, %v1041
    %v1106 = vpack.c.bf16 %v1042, %v1042
    %v1107 = vpack.c.bf16 %v1043, %v1043
    %v1108 = vpack.c.bf16 %v1044, %v1044
    %v1109 = vpack.c.bf16 %v1045, %v1045
    %v1110 = vpack.c.bf16 %v1046, %v1046
    %v1111 = vpack.c.bf16 %v1047, %v1047
    %v1112 = vpack.c.bf16 %v1048, %v1048
    %v1113 = vpack.c.bf16 %v1049, %v1049
    %v1114 = vpack.c.bf16 %v1050, %v1050
    %v1115 = vpack.c.bf16 %v1051, %v1051
    %v1116 = vpack.c.bf16 %v1052, %v1052
    %v1117 = vpack.c.bf16 %v1053, %v1053
    %v1118 = vpack.c.bf16 %v1054, %v1054
    %v1119 = vpack.c.bf16 %v1055, %v1055
    %v1120 = vpack.c.bf16 %v1056, %v1056
    %v1121 = vpack.c.bf16 %v1057, %v1057
    %v1122 = vpack.c.bf16 %v1058, %v1058
    %v1123 = vpack.c.bf16 %v1059, %v1059
    %v1124 = vpack.c.bf16 %v1060, %v1060
    %v1125 = vpack.c.bf16 %v1061, %v1061
    %v1126 = vpack.c.bf16 %v1062, %v1062
    %v1127 = vpack.c.bf16 %v1063, %v1063
    %v1128 = vpack.c.bf16 %v1064, %v1064
    %v1129 = vpack.c.bf16 %v1065, %v1065
    %v1130 = vpack.c.bf16 %v1066, %v1066
    %v1131 = vpack.c.bf16 %v1067, %v1067
    %v1132 = vpack.c.bf16 %v1068, %v1068
    %v1133 = vpack.c.bf16 %v1069, %v1069
    %v1134 = vpack.c.bf16 %v1070, %v1070
    %v1135 = vpack.c.bf16 %v1071, %v1071
    %v1136 = vpack.c.bf16 %v1072, %v1072
    %v1137 = vpack.c.bf16 %v1073, %v1073
    %v1138 = vpack.c.bf16 %v1074, %v1074
    %v1139 = vpack.c.bf16 %v1075, %v1075
    %vm1140 = vcmask 519168
    %1141 = vst.msk [vmem:[%s3] sm:$0xf] %vm1140, %v1076
    %1142 = vst.msk [vmem:[%s3 + $0x4] sm:$0xf] %vm1140, %v1077
    %1143 = vst.msk [vmem:[%s3 + $0x8] sm:$0xf] %vm1140, %v1078
    %1144 = vst.msk [vmem:[%s3 + $0xc] sm:$0xf] %vm1140, %v1079
    %1145 = vst.msk [vmem:[%s3 + $0x10] sm:$0xf] %vm1140, %v1080
    %1146 = vst.msk [vmem:[%s3 + $0x14] sm:$0xf] %vm1140, %v1081
    %1147 = vst.msk [vmem:[%s3 + $0x18] sm:$0xf] %vm1140, %v1082
    %1148 = vst.msk [vmem:[%s3 + $0x1c] sm:$0xf] %vm1140, %v1083
    %1149 = vst.msk [vmem:[%s3 + $0x20] sm:$0xf] %vm1140, %v1084
    %1150 = vst.msk [vmem:[%s3 + $0x24] sm:$0xf] %vm1140, %v1085
    %1151 = vst.msk [vmem:[%s3 + $0x28] sm:$0xf] %vm1140, %v1086
    %1152 = vst.msk [vmem:[%s3 + $0x2c] sm:$0xf] %vm1140, %v1087
    %1153 = vst.msk [vmem:[%s3 + $0x30] sm:$0xf] %vm1140, %v1088
    %1154 = vst.msk [vmem:[%s3 + $0x34] sm:$0xf] %vm1140, %v1089
    %1155 = vst.msk [vmem:[%s3 + $0x38] sm:$0xf] %vm1140, %v1090
    %1156 = vst.msk [vmem:[%s3 + $0x3c] sm:$0xf] %vm1140, %v1091
    %1157 = vst.msk [vmem:[%s3 + $0x40] sm:$0xf] %vm1140, %v1092
    %1158 = vst.msk [vmem:[%s3 + $0x44] sm:$0xf] %vm1140, %v1093
    %1159 = vst.msk [vmem:[%s3 + $0x48] sm:$0xf] %vm1140, %v1094
    %1160 = vst.msk [vmem:[%s3 + $0x4c] sm:$0xf] %vm1140, %v1095
    %1161 = vst.msk [vmem:[%s3 + $0x50] sm:$0xf] %vm1140, %v1096
    %1162 = vst.msk [vmem:[%s3 + $0x54] sm:$0xf] %vm1140, %v1097
    %1163 = vst.msk [vmem:[%s3 + $0x58] sm:$0xf] %vm1140, %v1098
    %1164 = vst.msk [vmem:[%s3 + $0x5c] sm:$0xf] %vm1140, %v1099
    %1165 = vst.msk [vmem:[%s3 + $0x60] sm:$0xf] %vm1140, %v1100
    %1166 = vst.msk [vmem:[%s3 + $0x64] sm:$0xf] %vm1140, %v1101
    %1167 = vst.msk [vmem:[%s3 + $0x68] sm:$0xf] %vm1140, %v1102
    %1168 = vst.msk [vmem:[%s3 + $0x6c] sm:$0xf] %vm1140, %v1103
    %1169 = vst.msk [vmem:[%s3 + $0x70] sm:$0xf] %vm1140, %v1104
    %1170 = vst.msk [vmem:[%s3 + $0x74] sm:$0xf] %vm1140, %v1105
    %1171 = vst.msk [vmem:[%s3 + $0x78] sm:$0xf] %vm1140, %v1106
    %1172 = vst.msk [vmem:[%s3 + $0x7c] sm:$0xf] %vm1140, %v1107
    %1173 = vst.msk [vmem:[%s3 + $0x80] sm:$0xf] %vm1140, %v1108
    %1174 = vst.msk [vmem:[%s3 + $0x84] sm:$0xf] %vm1140, %v1109
    %1175 = vst.msk [vmem:[%s3 + $0x88] sm:$0xf] %vm1140, %v1110
    %1176 = vst.msk [vmem:[%s3 + $0x8c] sm:$0xf] %vm1140, %v1111
    %1177 = vst.msk [vmem:[%s3 + $0x90] sm:$0xf] %vm1140, %v1112
    %1178 = vst.msk [vmem:[%s3 + $0x94] sm:$0xf] %vm1140, %v1113
    %1179 = vst.msk [vmem:[%s3 + $0x98] sm:$0xf] %vm1140, %v1114
    %1180 = vst.msk [vmem:[%s3 + $0x9c] sm:$0xf] %vm1140, %v1115
    %1181 = vst.msk [vmem:[%s3 + $0xa0] sm:$0xf] %vm1140, %v1116
    %1182 = vst.msk [vmem:[%s3 + $0xa4] sm:$0xf] %vm1140, %v1117
    %1183 = vst.msk [vmem:[%s3 + $0xa8] sm:$0xf] %vm1140, %v1118
    %1184 = vst.msk [vmem:[%s3 + $0xac] sm:$0xf] %vm1140, %v1119
    %1185 = vst.msk [vmem:[%s3 + $0xb0] sm:$0xf] %vm1140, %v1120
    %1186 = vst.msk [vmem:[%s3 + $0xb4] sm:$0xf] %vm1140, %v1121
    %1187 = vst.msk [vmem:[%s3 + $0xb8] sm:$0xf] %vm1140, %v1122
    %1188 = vst.msk [vmem:[%s3 + $0xbc] sm:$0xf] %vm1140, %v1123
    %1189 = vst.msk [vmem:[%s3 + $0xc0] sm:$0xf] %vm1140, %v1124
    %1190 = vst.msk [vmem:[%s3 + $0xc4] sm:$0xf] %vm1140, %v1125
    %1191 = vst.msk [vmem:[%s3 + $0xc8] sm:$0xf] %vm1140, %v1126
    %1192 = vst.msk [vmem:[%s3 + $0xcc] sm:$0xf] %vm1140, %v1127
    %1193 = vst.msk [vmem:[%s3 + $0xd0] sm:$0xf] %vm1140, %v1128
    %1194 = vst.msk [vmem:[%s3 + $0xd4] sm:$0xf] %vm1140, %v1129
    %1195 = vst.msk [vmem:[%s3 + $0xd8] sm:$0xf] %vm1140, %v1130
    %1196 = vst.msk [vmem:[%s3 + $0xdc] sm:$0xf] %vm1140, %v1131
    %1197 = vst.msk [vmem:[%s3 + $0xe0] sm:$0xf] %vm1140, %v1132
    %1198 = vst.msk [vmem:[%s3 + $0xe4] sm:$0xf] %vm1140, %v1133
    %1199 = vst.msk [vmem:[%s3 + $0xe8] sm:$0xf] %vm1140, %v1134
    %1200 = vst.msk [vmem:[%s3 + $0xec] sm:$0xf] %vm1140, %v1135
    %1201 = vst.msk [vmem:[%s3 + $0xf0] sm:$0xf] %vm1140, %v1136
    %1202 = vst.msk [vmem:[%s3 + $0xf4] sm:$0xf] %vm1140, %v1137
    %1203 = vst.msk [vmem:[%s3 + $0xf8] sm:$0xf] %vm1140, %v1138
    %1204 = vst.msk [vmem:[%s3 + $0xfc] sm:$0xf] %vm1140, %v1139
    // Predicated region
    $region18: #{tpu_custom_call.1} parent=1 // pred_check
      _
    $region19: #{tpu_custom_call.1} parent=1 // pred_check_branch
      %1206 = sbr.rel (0) target = $region21
    $region20: #{tpu_custom_call.1} parent=1 // pred_region
      _
    $region21: #{tpu_custom_call.1} parent=1 // pred_fallthru
      _
    // Predicated region
    $region22: #{tpu_custom_call.1} parent=1 // pred_check
      _
    $region23: #{tpu_custom_call.1} parent=1 // pred_check_branch
      %1208 = sbr.rel (0) target = $region25
    $region24: #{tpu_custom_call.1} parent=1 // pred_region
      _
    $region25: #{tpu_custom_call.1} parent=1 // pred_fallthru
      _
    %1209 = vsyncpa [#allocation3], 1

</llo_original>
